<compile_context>
chip_gen: v5e
topology: v5e:2x2
jax: 0.10.0
libtpu: 0.0.40
codegen_flags: <defaults>
</compile_context>

<pallas_src>
import functools

import numpy as np
import jax
import jax.numpy as jnp
from jax import lax
from jax.experimental import pallas as pl
from jax.experimental.pallas import tpu as pltpu


def _round_up(x, m):
    return ((x + m - 1) // m) * m


def _vmem_budgets():
    """(vmem_limit_bytes, tile_budget_bytes) derived from physical VMEM."""
    try:
        phys = int(pltpu.get_tpu_info().vmem_capacity_bytes)
    except Exception:
        phys = 64 * 1024 * 1024            # v7x-safe fallback
    return (phys * 3) // 4, int(phys * 0.35)


def _pick_tile_hw(hw_pad, d, p, num_levels, n, budget_bytes):
    """Largest 128-aligned spatial tile fitting the double-buffered VMEM budget,
    keeping >= 2 grid steps when possible (two v7x TensorCores)."""
    if hw_pad <= 128:
        return hw_pad
    # per column (f32): x block (d) + out block (L*d), both double-buffered,
    # plus in-kernel intermediates (score/iota/diff/run_quant ~ 10p + 6d floats)
    per_col = 4 * (2 * (d + num_levels * d) + 10 * p + 6 * d)
    max_cols = max(128, budget_bytes // per_col)
    max_cols = min(max_cols, 4096)          # vreg-pressure cap (v5e single vst slot)
    t = min(hw_pad, (max_cols // 128) * 128)
    while t > 128 and hw_pad % t != 0:
        t -= 128
    if n * (hw_pad // t) < 2:               # only hits when n == 1 and t == hw_pad
        cand = ((hw_pad // 2) // 128) * 128
        while cand >= 128 and hw_pad % cand != 0:
            cand -= 128
        if cand >= 128:
            t = cand
    return t


def _avq_kernel(x_ref, cb_ref, cbt_ref, c2_ref, out_ref, sse_ref, *,
                num_levels, hw_valid, tile_hw, need_mask):
    # x_ref:   (1, d, T)   one batch element's column tile (channels-major)
    # cb_ref:  (p, d)      codebook            (hoisted, constant per grid step)
    # cbt_ref: (d, p)      codebook transposed (hoisted)
    # c2_ref:  (p, 1)      ||c||^2 per code    (hoisted)
    # out_ref: (L, 1, d, T) quantized tile per level
    # sse_ref: (1, 1, lrows, 128) per-level SSE partial (row i = level i, lane-bcast)
    x = x_ref[0].astype(jnp.float32)                       # (d, T)
    cb = cb_ref[...].astype(jnp.float32)                   # (p, d)
    c2 = c2_ref[...]                                       # (p, 1)
    p = cb.shape[0]
    d, t = x.shape

    # Level-invariant scores, computed once per tile.  ||x||^2 is dropped
    # (argmin over codes is invariant to a per-column offset).
    score = c2 - 2.0 * jnp.dot(cb, x, preferred_element_type=jnp.float32)   # (p, T)
    prow = lax.broadcasted_iota(jnp.int32, (p, t), 0)

    if need_mask:
        col = pl.program_id(1) * tile_hw + lax.broadcasted_iota(jnp.int32, (1, t), 1)
        valid = col < hw_valid                             # (1, T) real (unpadded) cols

    lrows = sse_ref.shape[2]
    riota = lax.broadcasted_iota(jnp.int32, (lrows, 128), 0)
    sse_rows = jnp.zeros((lrows, 128), jnp.float32)

    run_min = None
    run_quant = None
    lo = 0
    for i in range(num_levels):                            # static unrolled, L small
        hi = 2 ** (i + 1)
        chunk = hi - lo
        # ---- argmin over the NEW chunk of codes [lo, hi) only -------------------
        if lo % 8 == 0 and chunk % 8 == 0:
            sc = score[lo:hi]                              # 8-sublane-aligned slice
            cmin = jnp.min(sc, axis=0, keepdims=True)                       # (1, T)
            crow = lax.broadcasted_iota(jnp.int32, (chunk, t), 0)
            carg = lo + jnp.min(jnp.where(sc == cmin, crow, chunk),
                                axis=0, keepdims=True)                      # (1, T)
        else:                                              # narrow chunks: mask trick
            in_chunk = (prow >= lo) & (prow < hi)
            masked = jnp.where(in_chunk, score, jnp.inf)
            cmin = jnp.min(masked, axis=0, keepdims=True)                   # (1, T)
            carg = jnp.min(jnp.where(in_chunk & (score == cmin), prow, p),
                           axis=0, keepdims=True)                           # (1, T)
        # ---- exact delta-gather: select-accumulate over the chunk's codes -------
        # (no one-hot MXU matmul -> emitted values are bit-exact f32 codebook rows)
        # TODO(synk): all-NaN score columns leave chunk_quant at 0 (torch.argmin
        # behavior on NaN is itself ill-defined); no special handling here.
        chunk_quant = jnp.zeros((d, t), jnp.float32)
        for j in range(lo, hi):
            code_col = cbt_ref[:, j:j + 1].astype(jnp.float32)              # (d, 1)
            chunk_quant = jnp.where(carg == j, code_col, chunk_quant)
        if run_min is None:
            run_min, run_quant = cmin, chunk_quant
        else:
            take_new = cmin < run_min          # strict '<': ties keep the earlier code
            run_quant = jnp.where(take_new, chunk_quant, run_quant)
            run_min = jnp.minimum(run_min, cmin)
        lo = hi

        out_ref[i, 0, :, :] = run_quant                    # lane-dense store

        # ---- fused per-level SSE partial (kills a post-kernel HBM pass) ---------
        diff = run_quant - x
        colsum = jnp.sum(diff * diff, axis=0, keepdims=True)                # (1, T)
        if need_mask:
            colsum = jnp.where(valid, colsum, 0.0)
        lvl_sse = jnp.sum(colsum, axis=1, keepdims=True)                    # (1, 1)
        sse_rows = sse_rows + jnp.where(riota == i, lvl_sse, 0.0)

    sse_ref[0, 0, :, :] = sse_rows


def _quantize_all_levels(x3, codebook, num_levels):
    """x3: (N, d, HW) any float dtype; codebook: (p, d) f32.

    Returns (quant, sse_levels):
      quant:      (L, N, d, HW_pad) f32
      sse_levels: (L,) f32  -- sum over all REAL elements of (q_i - x)^2
    """
    n, d, hw = x3.shape
    p = codebook.shape[0]
    assert 2 ** num_levels <= p, "num_vectors exceeds codebook size"

    hw_pad = _round_up(hw, 128)
    need_mask = hw_pad != hw
    if need_mask:
        x3 = jnp.pad(x3, ((0, 0), (0, 0), (0, hw_pad - hw)))

    vmem_limit, tile_budget = _vmem_budgets()
    tile_hw = _pick_tile_hw(hw_pad, d, p, num_levels, n, tile_budget)
    n_tiles = hw_pad // tile_hw
    grid = (n, n_tiles)
    lrows = max(8, _round_up(num_levels, 8))

    cbt = codebook.T                                        # (d, p), one-time tiny
    c2 = jnp.sum(codebook * codebook, axis=1, keepdims=True)  # (p, 1)

    kernel = functools.partial(_avq_kernel, num_levels=num_levels,
                               hw_valid=hw, tile_hw=tile_hw, need_mask=need_mask)

    flops = 2 * n * hw_pad * p * d + n * hw_pad * d * (p + 4 * num_levels)
    bytes_accessed = 4 * (n * d * hw_pad * (1 + num_levels)
                          + 2 * p * d + p + n * n_tiles * lrows * 128)

    quant, sse = pl.pallas_call(
        kernel,
        out_shape=(
            jax.ShapeDtypeStruct((num_levels, n, d, hw_pad), jnp.float32),
            jax.ShapeDtypeStruct((n, n_tiles, lrows, 128), jnp.float32),
        ),
        grid_spec=pltpu.PrefetchScalarGridSpec(
            num_scalar_prefetch=0,
            grid=grid,
            in_specs=[
                pl.BlockSpec((1, d, tile_hw), lambda b, s: (b, 0, s)),
                pl.BlockSpec((p, d), lambda b, s: (0, 0)),
                pl.BlockSpec((d, p), lambda b, s: (0, 0)),
                pl.BlockSpec((p, 1), lambda b, s: (0, 0)),
            ],
            out_specs=(
                pl.BlockSpec((num_levels, 1, d, tile_hw), lambda b, s: (0, b, 0, s)),
                pl.BlockSpec((1, 1, lrows, 128), lambda b, s: (b, s, 0, 0)),
            ),
        ),
        compiler_params=pltpu.CompilerParams(
            dimension_semantics=("parallel", "parallel"),
            vmem_limit_bytes=vmem_limit),
        cost_estimate=pl.CostEstimate(flops=flops, transcendentals=0,
                                      bytes_accessed=bytes_accessed),
    )(x3, codebook, cbt, c2)

    sse_levels = jnp.sum(sse[:, :, :num_levels, 0], axis=(0, 1))            # (L,)
    return quant, sse_levels


@jax.custom_vjp
def _straight_through(x, q):
    # Forward value is exactly q (== x + stop_grad(q - x)); backward is identity to x.
    return q


def _st_fwd(x, q):
    return q, None


def _st_bwd(_, g):
    return (g, jnp.zeros_like(g))


_straight_through.defvjp(_st_fwd, _st_bwd)


def adaptive_vector_quantizer_forward(x_nchw, codebook, prev_vecs, num_vectors,
                                      lambda_c=0.1, lambda_p=0.33, training=True):
    """Mirrors AdaptiveVectorQuantizer.forward (forward values).

    Returns (quant_vecs, losses, actives):
      quant_vecs: list of NCHW arrays (one per level; straight-through when training)
      losses:     list of scalar cb_loss values (0 if not training)
      actives:    codebook[:2**num_levels]
    """
    n, d, h, w = x_nchw.shape
    hw = h * w
    num_levels = int(np.log2(num_vectors))

    cb_f = codebook.astype(jnp.float32)
    x3 = x_nchw.reshape(n, d, hw)                  # free reshape; dtype cast is in-kernel

    quant_all, sse_levels = _quantize_all_levels(x3, cb_f, num_levels)
    hw_pad = quant_all.shape[-1]
    numel = n * d * h * w
    x_f = x_nchw.astype(jnp.float32)               # only for the ST vjp signature

    quant_vecs, losses = [], []
    for i in range(num_levels):
        q_lvl = quant_all[i]
        if hw_pad != hw:
            q_lvl = q_lvl[:, :, :hw]
        q_nchw = q_lvl.reshape(n, d, h, w)         # already channels-major, no permute
        if training:
            # q_latent and e_latent have identical forward values (they differ only
            # in stop_gradient placement), both equal to the fused in-kernel MSE.
            # TODO(synk): gradients of the codebook losses are not wired through the
            # Pallas kernel; only the straight-through path has a custom VJP.
            mse_i = sse_levels[i] / numel
            if i == 0:
                cb_loss = (1.0 + lambda_c) * mse_i
            elif i == 1:
                prox = lambda_p * jnp.mean((prev_vecs[:2] - cb_f[:2]) ** 2)
                cb_loss = (1.0 + lambda_c) * mse_i + prox
            else:
                prox = lambda_p * jnp.mean((prev_vecs[:2 ** i] - cb_f[:2 ** i]) ** 2)
                cb_loss = mse_i + prox
            quant_vecs.append(_straight_through(x_f, q_nchw))
        else:
            cb_loss = 0.0
            quant_vecs.append(q_nchw)
        losses.append(cb_loss)

    actives = cb_f[:2 ** num_levels]
    return quant_vecs, losses, actives


def _reference_forward_values(x_nchw, codebook, num_vectors):
    """Pure-JAX mirror of the PyTorch forward (quantized values only)."""
    n, d, h, w = x_nchw.shape
    num_levels = int(np.log2(num_vectors))
    flat = jnp.transpose(x_nchw, (0, 2, 3, 1)).reshape(-1, d)
    outs = []
    for i in range(num_levels):
        act = codebook[:2 ** (i + 1)]
        dist = (jnp.sum(flat ** 2, axis=1, keepdims=True)
                + jnp.sum(act ** 2, axis=1)[None, :]
                - 2.0 * jnp.dot(flat, act.T))
        idx = jnp.argmin(dist, axis=1)
        q = codebook[idx].reshape(n, h, w, d)
        outs.append(jnp.transpose(q, (0, 3, 1, 2)))
    return outs


if __name__ == "__main__":
    # num_embeddings d = 32 (channel dim), codebook_size p = 16,
    # num_vectors = 8 -> 3 levels (2, 4, 8 active codes).
    d = 32
    p = 16
    num_vectors = 8
    N, H, W = 2, 8, 8
    lambda_c, lambda_p = 0.1, 0.33

    key = jax.random.PRNGKey(0)
    k_x, k_cb, k_prev = jax.random.split(key, 3)

    x = jax.random.normal(k_x, (N, d, H, W), dtype=jnp.float32)        # NCHW
    codebook = jax.random.uniform(k_cb, (p, d), dtype=jnp.float32,
                                  minval=-1.0 / p, maxval=1.0 / p)
    prev_vecs = jax.random.uniform(k_prev, (p, d), dtype=jnp.float32,
                                   minval=-1.0 / p, maxval=1.0 / p)

    quant_vecs, losses, actives = adaptive_vector_quantizer_forward(
        x, codebook, prev_vecs, num_vectors,
        lambda_c=lambda_c, lambda_p=lambda_p, training=True)

    for qv in quant_vecs:
        jax.block_until_ready(qv)
    losses = [jax.block_until_ready(jnp.asarray(l)) for l in losses]
    jax.block_until_ready(actives)

    L = int(np.log2(num_vectors))
    assert len(quant_vecs) == L
    assert quant_vecs[0].shape == (N, d, H, W)
    assert actives.shape == (2 ** L, d)

    # 1) Quantized values vs pure-JAX reference.  Loose per-pixel budget tolerates
    # rare argmin tie flips (default-precision score matmul, dropped ||x||^2) while
    # still catching layout / indexing bugs, which mismatch nearly everywhere.
    ref = _reference_forward_values(x, codebook, num_vectors)
    for i in range(L):
        mism = jnp.mean(
            jnp.any(jnp.abs(quant_vecs[i] - ref[i]) > 1e-5, axis=1)
            .astype(jnp.float32))
        assert float(mism) < 0.1, f"level {i}: mismatch fraction {float(mism)}"

    # 2) Fused in-kernel losses vs losses recomputed from the kernel's own outputs
    # (same data, so only reduction-order noise).
    for i in range(L):
        mse_i = jnp.mean((quant_vecs[i] - x) ** 2)
        if i == 0:
            expect = (1.0 + lambda_c) * mse_i
        elif i == 1:
            expect = (1.0 + lambda_c) * mse_i + lambda_p * jnp.mean(
                (prev_vecs[:2] - codebook[:2]) ** 2)
        else:
            expect = mse_i + lambda_p * jnp.mean(
                (prev_vecs[:2 ** i] - codebook[:2 ** i]) ** 2)
        np.testing.assert_allclose(np.asarray(losses[i]), np.asarray(expect),
                                   rtol=1e-4, atol=1e-6)

    print("KERNEL_OK")
</pallas_src>

<mosaic_0001>
module attributes {stable_mosaic.version = 11 : i64} {
  func.func @_avq_kernel(%arg0: i32, %arg1: i32, %arg2: memref<1x32x128xf32, #tpu.memory_space<vmem>>, %arg3: memref<16x32xf32, #tpu.memory_space<vmem>>, %arg4: memref<32x16xf32, #tpu.memory_space<vmem>>, %arg5: memref<16x1xf32, #tpu.memory_space<vmem>>, %arg6: memref<3x1x32x128xf32, #tpu.memory_space<vmem>>, %arg7: memref<1x1x8x128xf32, #tpu.memory_space<vmem>>) attributes {dimension_semantics = [#tpu.dimension_semantics<parallel>, #tpu.dimension_semantics<parallel>], iteration_bounds = array<i64: 2, 1>, scalar_prefetch = 0 : i64, scratch_operands = 0 : i64, tpu.core_type = #tpu.core_type<tc>, window_params = [{transform_indices = @transform_0, window_bounds = array<i64: 1, 32, 128>}, {pipeline_mode = #tpu.pipeline_mode<synchronous>, transform_indices = @transform_1, window_bounds = array<i64: 16, 32>}, {pipeline_mode = #tpu.pipeline_mode<synchronous>, transform_indices = @transform_2, window_bounds = array<i64: 32, 16>}, {pipeline_mode = #tpu.pipeline_mode<synchronous>, transform_indices = @transform_3, window_bounds = array<i64: 16, 1>}, {transform_indices = @transform_4, window_bounds = array<i64: 3, 1, 32, 128>}, {transform_indices = @transform_5, window_bounds = array<i64: 1, 1, 8, 128>}]} {
    %c0 = arith.constant 0 : index
    %c0_0 = arith.constant 0 : index
    %c0_1 = arith.constant 0 : index
    %0 = vector.load %arg2[%c0, %c0_0, %c0_1] : memref<1x32x128xf32, #tpu.memory_space<vmem>>, vector<1x32x128xf32>
    %1 = vector.shape_cast %0 : vector<1x32x128xf32> to vector<32x128xf32>
    %c0_2 = arith.constant 0 : index
    %c0_3 = arith.constant 0 : index
    %2 = vector.load %arg3[%c0_2, %c0_3] : memref<16x32xf32, #tpu.memory_space<vmem>>, vector<16x32xf32>
    %c0_4 = arith.constant 0 : index
    %c0_5 = arith.constant 0 : index
    %3 = vector.load %arg5[%c0_4, %c0_5] : memref<16x1xf32, #tpu.memory_space<vmem>>, vector<16x1xf32>
    %cst = arith.constant dense<0.000000e+00> : vector<16x128xf32>
    %4 = tpu.matmul %2, %1, %cst {dimension_numbers = #tpu.dot_dimension_numbers<[1], [0], [0], [1], [0, 0, 1, 1], [], []>} : vector<16x32xf32>, vector<32x128xf32>, vector<16x128xf32> -> vector<16x128xf32>
    %cst_6 = arith.constant 2.000000e+00 : f32
    %5 = vector.broadcast %cst_6 : f32 to vector<16x128xf32>
    %6 = arith.mulf %5, %4 : vector<16x128xf32>
    %7 = vector.broadcast %3 : vector<16x1xf32> to vector<16x128xf32>
    %8 = arith.subf %7, %6 : vector<16x128xf32>
    %9 = tpu.iota {dimensions = array<i32: 0>} : vector<16x128xi32>
    %c128_i32 = arith.constant 128 : i32
    %10 = arith.muli %arg1, %c128_i32 : i32
    %11 = tpu.iota {dimensions = array<i32: 1>} : vector<1x128xi32>
    %12 = vector.broadcast %10 : i32 to vector<1x128xi32>
    %13 = arith.addi %12, %11 : vector<1x128xi32>
    %c64_i32 = arith.constant 64 : i32
    %14 = vector.broadcast %c64_i32 : i32 to vector<1x128xi32>
    %15 = arith.cmpi slt, %13, %14 : vector<1x128xi32>
    %16 = tpu.iota {dimensions = array<i32: 0>} : vector<8x128xi32>
    %cst_7 = arith.constant 0.000000e+00 : f32
    %17 = vector.broadcast %cst_7 : f32 to vector<8x128xf32>
    %c0_i32 = arith.constant 0 : i32
    %18 = vector.broadcast %c0_i32 : i32 to vector<16x128xi32>
    %19 = arith.cmpi sge, %9, %18 : vector<16x128xi32>
    %c2_i32 = arith.constant 2 : i32
    %20 = vector.broadcast %c2_i32 : i32 to vector<16x128xi32>
    %21 = arith.cmpi slt, %9, %20 : vector<16x128xi32>
    %22 = arith.andi %19, %21 : vector<16x128xi1>
    %cst_8 = arith.constant 0x7F800000 : f32
    %23 = vector.broadcast %cst_8 : f32 to vector<16x128xf32>
    %24 = arith.select %22, %8, %23 : vector<16x128xi1>, vector<16x128xf32>
    %cst_9 = arith.constant dense<0x7F800000> : vector<128xf32>
    %25 = vector.multi_reduction <minimumf>, %24, %cst_9 [0] : vector<16x128xf32> to vector<128xf32>
    %26 = vector.shape_cast %25 : vector<128xf32> to vector<1x128xf32>
    %27 = vector.broadcast %26 : vector<1x128xf32> to vector<16x128xf32>
    %28 = arith.cmpf oeq, %8, %27 : vector<16x128xf32>
    %29 = arith.andi %22, %28 : vector<16x128xi1>
    %c16_i32 = arith.constant 16 : i32
    %30 = vector.broadcast %c16_i32 : i32 to vector<16x128xi32>
    %31 = arith.select %29, %9, %30 : vector<16x128xi1>, vector<16x128xi32>
    %cst_10 = arith.constant dense<2147483647> : vector<128xi32>
    %32 = vector.multi_reduction <minsi>, %31, %cst_10 [0] : vector<16x128xi32> to vector<128xi32>
    %33 = vector.shape_cast %32 : vector<128xi32> to vector<1x128xi32>
    %cst_11 = arith.constant 0.000000e+00 : f32
    %34 = vector.broadcast %cst_11 : f32 to vector<32x128xf32>
    %c0_12 = arith.constant 0 : index
    %c0_13 = arith.constant 0 : index
    %35 = vector.load %arg4[%c0_12, %c0_13] : memref<32x16xf32, #tpu.memory_space<vmem>>, vector<32x1xf32>
    %c0_i32_14 = arith.constant 0 : i32
    %36 = vector.broadcast %c0_i32_14 : i32 to vector<1x128xi32>
    %37 = arith.cmpi eq, %33, %36 : vector<1x128xi32>
    %38 = vector.shape_cast %37 : vector<1x128xi1> to vector<1x128xi1>
    %39 = vector.broadcast %38 : vector<1x128xi1> to vector<32x128xi1>
    %40 = vector.shape_cast %35 : vector<32x1xf32> to vector<32x1xf32>
    %41 = vector.broadcast %40 : vector<32x1xf32> to vector<32x128xf32>
    %42 = arith.select %39, %41, %34 : vector<32x128xi1>, vector<32x128xf32>
    %c0_15 = arith.constant 0 : index
    %c1 = arith.constant 1 : index
    %43 = vector.load %arg4[%c0_15, %c1] : memref<32x16xf32, #tpu.memory_space<vmem>>, vector<32x1xf32>
    %c1_i32 = arith.constant 1 : i32
    %44 = vector.broadcast %c1_i32 : i32 to vector<1x128xi32>
    %45 = arith.cmpi eq, %33, %44 : vector<1x128xi32>
    %46 = vector.shape_cast %45 : vector<1x128xi1> to vector<1x128xi1>
    %47 = vector.broadcast %46 : vector<1x128xi1> to vector<32x128xi1>
    %48 = vector.shape_cast %43 : vector<32x1xf32> to vector<32x1xf32>
    %49 = vector.broadcast %48 : vector<32x1xf32> to vector<32x128xf32>
    %50 = arith.select %47, %49, %42 : vector<32x128xi1>, vector<32x128xf32>
    %c0_16 = arith.constant 0 : index
    %c0_17 = arith.constant 0 : index
    %c0_18 = arith.constant 0 : index
    %c0_19 = arith.constant 0 : index
    %51 = vector.load %arg6[%c0_16, %c0_17, %c0_18, %c0_19] : memref<3x1x32x128xf32, #tpu.memory_space<vmem>>, vector<1x1x32x128xf32>
    %52 = vector.shape_cast %51 : vector<1x1x32x128xf32> to vector<32x128xf32>
    %53 = vector.shape_cast %50 : vector<32x128xf32> to vector<1x1x32x128xf32>
    tpu.vector_store %arg6[%c0_16, %c0_17, %c0_18, %c0_19], %53 {strides = array<i32>} : memref<3x1x32x128xf32, #tpu.memory_space<vmem>>, vector<1x1x32x128xf32>,
    %54 = arith.subf %50, %1 : vector<32x128xf32>
    %55 = arith.mulf %54, %54 : vector<32x128xf32>
    %cst_20 = arith.constant dense<0.000000e+00> : vector<128xf32>
    %56 = vector.multi_reduction <add>, %55, %cst_20 [0] : vector<32x128xf32> to vector<128xf32>
    %57 = vector.shape_cast %56 : vector<128xf32> to vector<1x128xf32>
    %cst_21 = arith.constant 0.000000e+00 : f32
    %58 = vector.broadcast %cst_21 : f32 to vector<1x128xf32>
    %59 = arith.select %15, %57, %58 : vector<1x128xi1>, vector<1x128xf32>
    %cst_22 = arith.constant dense<0.000000e+00> : vector<1xf32>
    %60 = vector.multi_reduction <add>, %59, %cst_22 [1] : vector<1x128xf32> to vector<1xf32>
    %61 = vector.shape_cast %60 : vector<1xf32> to vector<1x1xf32>
    %c0_i32_23 = arith.constant 0 : i32
    %62 = vector.broadcast %c0_i32_23 : i32 to vector<8x128xi32>
    %63 = arith.cmpi eq, %16, %62 : vector<8x128xi32>
    %cst_24 = arith.constant 0.000000e+00 : f32
    %64 = vector.shape_cast %61 : vector<1x1xf32> to vector<1x1xf32>
    %65 = vector.broadcast %64 : vector<1x1xf32> to vector<8x128xf32>
    %66 = vector.broadcast %cst_24 : f32 to vector<8x128xf32>
    %67 = arith.select %63, %65, %66 : vector<8x128xi1>, vector<8x128xf32>
    %68 = arith.addf %17, %67 : vector<8x128xf32>
    %c2_i32_25 = arith.constant 2 : i32
    %69 = vector.broadcast %c2_i32_25 : i32 to vector<16x128xi32>
    %70 = arith.cmpi sge, %9, %69 : vector<16x128xi32>
    %c4_i32 = arith.constant 4 : i32
    %71 = vector.broadcast %c4_i32 : i32 to vector<16x128xi32>
    %72 = arith.cmpi slt, %9, %71 : vector<16x128xi32>
    %73 = arith.andi %70, %72 : vector<16x128xi1>
    %cst_26 = arith.constant 0x7F800000 : f32
    %74 = vector.broadcast %cst_26 : f32 to vector<16x128xf32>
    %75 = arith.select %73, %8, %74 : vector<16x128xi1>, vector<16x128xf32>
    %cst_27 = arith.constant dense<0x7F800000> : vector<128xf32>
    %76 = vector.multi_reduction <minimumf>, %75, %cst_27 [0] : vector<16x128xf32> to vector<128xf32>
    %77 = vector.shape_cast %76 : vector<128xf32> to vector<1x128xf32>
    %78 = vector.broadcast %77 : vector<1x128xf32> to vector<16x128xf32>
    %79 = arith.cmpf oeq, %8, %78 : vector<16x128xf32>
    %80 = arith.andi %73, %79 : vector<16x128xi1>
    %c16_i32_28 = arith.constant 16 : i32
    %81 = vector.broadcast %c16_i32_28 : i32 to vector<16x128xi32>
    %82 = arith.select %80, %9, %81 : vector<16x128xi1>, vector<16x128xi32>
    %cst_29 = arith.constant dense<2147483647> : vector<128xi32>
    %83 = vector.multi_reduction <minsi>, %82, %cst_29 [0] : vector<16x128xi32> to vector<128xi32>
    %84 = vector.shape_cast %83 : vector<128xi32> to vector<1x128xi32>
    %cst_30 = arith.constant 0.000000e+00 : f32
    %85 = vector.broadcast %cst_30 : f32 to vector<32x128xf32>
    %c0_31 = arith.constant 0 : index
    %c2 = arith.constant 2 : index
    %86 = vector.load %arg4[%c0_31, %c2] : memref<32x16xf32, #tpu.memory_space<vmem>>, vector<32x1xf32>
    %c2_i32_32 = arith.constant 2 : i32
    %87 = vector.broadcast %c2_i32_32 : i32 to vector<1x128xi32>
    %88 = arith.cmpi eq, %84, %87 : vector<1x128xi32>
    %89 = vector.shape_cast %88 : vector<1x128xi1> to vector<1x128xi1>
    %90 = vector.broadcast %89 : vector<1x128xi1> to vector<32x128xi1>
    %91 = vector.shape_cast %86 : vector<32x1xf32> to vector<32x1xf32>
    %92 = vector.broadcast %91 : vector<32x1xf32> to vector<32x128xf32>
    %93 = arith.select %90, %92, %85 : vector<32x128xi1>, vector<32x128xf32>
    %c0_33 = arith.constant 0 : index
    %c3 = arith.constant 3 : index
    %94 = vector.load %arg4[%c0_33, %c3] : memref<32x16xf32, #tpu.memory_space<vmem>>, vector<32x1xf32>
    %c3_i32 = arith.constant 3 : i32
    %95 = vector.broadcast %c3_i32 : i32 to vector<1x128xi32>
    %96 = arith.cmpi eq, %84, %95 : vector<1x128xi32>
    %97 = vector.shape_cast %96 : vector<1x128xi1> to vector<1x128xi1>
    %98 = vector.broadcast %97 : vector<1x128xi1> to vector<32x128xi1>
    %99 = vector.shape_cast %94 : vector<32x1xf32> to vector<32x1xf32>
    %100 = vector.broadcast %99 : vector<32x1xf32> to vector<32x128xf32>
    %101 = arith.select %98, %100, %93 : vector<32x128xi1>, vector<32x128xf32>
    %102 = arith.cmpf olt, %77, %26 : vector<1x128xf32>
    %103 = vector.shape_cast %102 : vector<1x128xi1> to vector<1x128xi1>
    %104 = vector.broadcast %103 : vector<1x128xi1> to vector<32x128xi1>
    %105 = arith.select %104, %101, %50 : vector<32x128xi1>, vector<32x128xf32>
    %106 = arith.minimumf %26, %77 : vector<1x128xf32>
    %c1_34 = arith.constant 1 : index
    %c0_35 = arith.constant 0 : index
    %c0_36 = arith.constant 0 : index
    %c0_37 = arith.constant 0 : index
    %107 = vector.load %arg6[%c1_34, %c0_35, %c0_36, %c0_37] : memref<3x1x32x128xf32, #tpu.memory_space<vmem>>, vector<1x1x32x128xf32>
    %108 = vector.shape_cast %107 : vector<1x1x32x128xf32> to vector<32x128xf32>
    %109 = vector.shape_cast %105 : vector<32x128xf32> to vector<1x1x32x128xf32>
    tpu.vector_store %arg6[%c1_34, %c0_35, %c0_36, %c0_37], %109 {strides = array<i32>} : memref<3x1x32x128xf32, #tpu.memory_space<vmem>>, vector<1x1x32x128xf32>,
    %110 = arith.subf %105, %1 : vector<32x128xf32>
    %111 = arith.mulf %110, %110 : vector<32x128xf32>
    %cst_38 = arith.constant dense<0.000000e+00> : vector<128xf32>
    %112 = vector.multi_reduction <add>, %111, %cst_38 [0] : vector<32x128xf32> to vector<128xf32>
    %113 = vector.shape_cast %112 : vector<128xf32> to vector<1x128xf32>
    %cst_39 = arith.constant 0.000000e+00 : f32
    %114 = vector.broadcast %cst_39 : f32 to vector<1x128xf32>
    %115 = arith.select %15, %113, %114 : vector<1x128xi1>, vector<1x128xf32>
    %cst_40 = arith.constant dense<0.000000e+00> : vector<1xf32>
    %116 = vector.multi_reduction <add>, %115, %cst_40 [1] : vector<1x128xf32> to vector<1xf32>
    %117 = vector.shape_cast %116 : vector<1xf32> to vector<1x1xf32>
    %c1_i32_41 = arith.constant 1 : i32
    %118 = vector.broadcast %c1_i32_41 : i32 to vector<8x128xi32>
    %119 = arith.cmpi eq, %16, %118 : vector<8x128xi32>
    %cst_42 = arith.constant 0.000000e+00 : f32
    %120 = vector.shape_cast %117 : vector<1x1xf32> to vector<1x1xf32>
    %121 = vector.broadcast %120 : vector<1x1xf32> to vector<8x128xf32>
    %122 = vector.broadcast %cst_42 : f32 to vector<8x128xf32>
    %123 = arith.select %119, %121, %122 : vector<8x128xi1>, vector<8x128xf32>
    %124 = arith.addf %68, %123 : vector<8x128xf32>
    %c4_i32_43 = arith.constant 4 : i32
    %125 = vector.broadcast %c4_i32_43 : i32 to vector<16x128xi32>
    %126 = arith.cmpi sge, %9, %125 : vector<16x128xi32>
    %c8_i32 = arith.constant 8 : i32
    %127 = vector.broadcast %c8_i32 : i32 to vector<16x128xi32>
    %128 = arith.cmpi slt, %9, %127 : vector<16x128xi32>
    %129 = arith.andi %126, %128 : vector<16x128xi1>
    %cst_44 = arith.constant 0x7F800000 : f32
    %130 = vector.broadcast %cst_44 : f32 to vector<16x128xf32>
    %131 = arith.select %129, %8, %130 : vector<16x128xi1>, vector<16x128xf32>
    %cst_45 = arith.constant dense<0x7F800000> : vector<128xf32>
    %132 = vector.multi_reduction <minimumf>, %131, %cst_45 [0] : vector<16x128xf32> to vector<128xf32>
    %133 = vector.shape_cast %132 : vector<128xf32> to vector<1x128xf32>
    %134 = vector.broadcast %133 : vector<1x128xf32> to vector<16x128xf32>
    %135 = arith.cmpf oeq, %8, %134 : vector<16x128xf32>
    %136 = arith.andi %129, %135 : vector<16x128xi1>
    %c16_i32_46 = arith.constant 16 : i32
    %137 = vector.broadcast %c16_i32_46 : i32 to vector<16x128xi32>
    %138 = arith.select %136, %9, %137 : vector<16x128xi1>, vector<16x128xi32>
    %cst_47 = arith.constant dense<2147483647> : vector<128xi32>
    %139 = vector.multi_reduction <minsi>, %138, %cst_47 [0] : vector<16x128xi32> to vector<128xi32>
    %140 = vector.shape_cast %139 : vector<128xi32> to vector<1x128xi32>
    %cst_48 = arith.constant 0.000000e+00 : f32
    %141 = vector.broadcast %cst_48 : f32 to vector<32x128xf32>
    %c0_49 = arith.constant 0 : index
    %c4 = arith.constant 4 : index
    %142 = vector.load %arg4[%c0_49, %c4] : memref<32x16xf32, #tpu.memory_space<vmem>>, vector<32x1xf32>
    %c4_i32_50 = arith.constant 4 : i32
    %143 = vector.broadcast %c4_i32_50 : i32 to vector<1x128xi32>
    %144 = arith.cmpi eq, %140, %143 : vector<1x128xi32>
    %145 = vector.shape_cast %144 : vector<1x128xi1> to vector<1x128xi1>
    %146 = vector.broadcast %145 : vector<1x128xi1> to vector<32x128xi1>
    %147 = vector.shape_cast %142 : vector<32x1xf32> to vector<32x1xf32>
    %148 = vector.broadcast %147 : vector<32x1xf32> to vector<32x128xf32>
    %149 = arith.select %146, %148, %141 : vector<32x128xi1>, vector<32x128xf32>
    %c0_51 = arith.constant 0 : index
    %c5 = arith.constant 5 : index
    %150 = vector.load %arg4[%c0_51, %c5] : memref<32x16xf32, #tpu.memory_space<vmem>>, vector<32x1xf32>
    %c5_i32 = arith.constant 5 : i32
    %151 = vector.broadcast %c5_i32 : i32 to vector<1x128xi32>
    %152 = arith.cmpi eq, %140, %151 : vector<1x128xi32>
    %153 = vector.shape_cast %152 : vector<1x128xi1> to vector<1x128xi1>
    %154 = vector.broadcast %153 : vector<1x128xi1> to vector<32x128xi1>
    %155 = vector.shape_cast %150 : vector<32x1xf32> to vector<32x1xf32>
    %156 = vector.broadcast %155 : vector<32x1xf32> to vector<32x128xf32>
    %157 = arith.select %154, %156, %149 : vector<32x128xi1>, vector<32x128xf32>
    %c0_52 = arith.constant 0 : index
    %c6 = arith.constant 6 : index
    %158 = vector.load %arg4[%c0_52, %c6] : memref<32x16xf32, #tpu.memory_space<vmem>>, vector<32x1xf32>
    %c6_i32 = arith.constant 6 : i32
    %159 = vector.broadcast %c6_i32 : i32 to vector<1x128xi32>
    %160 = arith.cmpi eq, %140, %159 : vector<1x128xi32>
    %161 = vector.shape_cast %160 : vector<1x128xi1> to vector<1x128xi1>
    %162 = vector.broadcast %161 : vector<1x128xi1> to vector<32x128xi1>
    %163 = vector.shape_cast %158 : vector<32x1xf32> to vector<32x1xf32>
    %164 = vector.broadcast %163 : vector<32x1xf32> to vector<32x128xf32>
    %165 = arith.select %162, %164, %157 : vector<32x128xi1>, vector<32x128xf32>
    %c0_53 = arith.constant 0 : index
    %c7 = arith.constant 7 : index
    %166 = vector.load %arg4[%c0_53, %c7] : memref<32x16xf32, #tpu.memory_space<vmem>>, vector<32x1xf32>
    %c7_i32 = arith.constant 7 : i32
    %167 = vector.broadcast %c7_i32 : i32 to vector<1x128xi32>
    %168 = arith.cmpi eq, %140, %167 : vector<1x128xi32>
    %169 = vector.shape_cast %168 : vector<1x128xi1> to vector<1x128xi1>
    %170 = vector.broadcast %169 : vector<1x128xi1> to vector<32x128xi1>
    %171 = vector.shape_cast %166 : vector<32x1xf32> to vector<32x1xf32>
    %172 = vector.broadcast %171 : vector<32x1xf32> to vector<32x128xf32>
    %173 = arith.select %170, %172, %165 : vector<32x128xi1>, vector<32x128xf32>
    %174 = arith.cmpf olt, %133, %106 : vector<1x128xf32>
    %175 = vector.shape_cast %174 : vector<1x128xi1> to vector<1x128xi1>
    %176 = vector.broadcast %175 : vector<1x128xi1> to vector<32x128xi1>
    %177 = arith.select %176, %173, %105 : vector<32x128xi1>, vector<32x128xf32>
    %c2_54 = arith.constant 2 : index
    %c0_55 = arith.constant 0 : index
    %c0_56 = arith.constant 0 : index
    %c0_57 = arith.constant 0 : index
    %178 = vector.load %arg6[%c2_54, %c0_55, %c0_56, %c0_57] : memref<3x1x32x128xf32, #tpu.memory_space<vmem>>, vector<1x1x32x128xf32>
    %179 = vector.shape_cast %178 : vector<1x1x32x128xf32> to vector<32x128xf32>
    %180 = vector.shape_cast %177 : vector<32x128xf32> to vector<1x1x32x128xf32>
    tpu.vector_store %arg6[%c2_54, %c0_55, %c0_56, %c0_57], %180 {strides = array<i32>} : memref<3x1x32x128xf32, #tpu.memory_space<vmem>>, vector<1x1x32x128xf32>,
    %181 = arith.subf %177, %1 : vector<32x128xf32>
    %182 = arith.mulf %181, %181 : vector<32x128xf32>
    %cst_58 = arith.constant dense<0.000000e+00> : vector<128xf32>
    %183 = vector.multi_reduction <add>, %182, %cst_58 [0] : vector<32x128xf32> to vector<128xf32>
    %184 = vector.shape_cast %183 : vector<128xf32> to vector<1x128xf32>
    %cst_59 = arith.constant 0.000000e+00 : f32
    %185 = vector.broadcast %cst_59 : f32 to vector<1x128xf32>
    %186 = arith.select %15, %184, %185 : vector<1x128xi1>, vector<1x128xf32>
    %cst_60 = arith.constant dense<0.000000e+00> : vector<1xf32>
    %187 = vector.multi_reduction <add>, %186, %cst_60 [1] : vector<1x128xf32> to vector<1xf32>
    %188 = vector.shape_cast %187 : vector<1xf32> to vector<1x1xf32>
    %c2_i32_61 = arith.constant 2 : i32
    %189 = vector.broadcast %c2_i32_61 : i32 to vector<8x128xi32>
    %190 = arith.cmpi eq, %16, %189 : vector<8x128xi32>
    %cst_62 = arith.constant 0.000000e+00 : f32
    %191 = vector.shape_cast %188 : vector<1x1xf32> to vector<1x1xf32>
    %192 = vector.broadcast %191 : vector<1x1xf32> to vector<8x128xf32>
    %193 = vector.broadcast %cst_62 : f32 to vector<8x128xf32>
    %194 = arith.select %190, %192, %193 : vector<8x128xi1>, vector<8x128xf32>
    %195 = arith.addf %124, %194 : vector<8x128xf32>
    %c0_63 = arith.constant 0 : index
    %c0_64 = arith.constant 0 : index
    %c0_65 = arith.constant 0 : index
    %c0_66 = arith.constant 0 : index
    %196 = vector.load %arg7[%c0_63, %c0_64, %c0_65, %c0_66] : memref<1x1x8x128xf32, #tpu.memory_space<vmem>>, vector<1x1x8x128xf32>
    %197 = vector.shape_cast %196 : vector<1x1x8x128xf32> to vector<8x128xf32>
    %198 = vector.shape_cast %195 : vector<8x128xf32> to vector<1x1x8x128xf32>
    tpu.vector_store %arg7[%c0_63, %c0_64, %c0_65, %c0_66], %198 {strides = array<i32>} : memref<1x1x8x128xf32, #tpu.memory_space<vmem>>, vector<1x1x8x128xf32>,
    return
  }
  func.func @transform_0(%arg0: i32, %arg1: i32) -> (i32, i32, i32) {
    %c0_i32 = arith.constant 0 : i32
    %c0_i32_0 = arith.constant 0 : i32
    return %arg0, %c0_i32, %arg1 : i32, i32, i32
  }
  func.func @transform_1(%arg0: i32, %arg1: i32) -> (i32, i32) {
    %c0_i32 = arith.constant 0 : i32
    %c0_i32_0 = arith.constant 0 : i32
    %c0_i32_1 = arith.constant 0 : i32
    return %c0_i32, %c0_i32_0 : i32, i32
  }
  func.func @transform_2(%arg0: i32, %arg1: i32) -> (i32, i32) {
    %c0_i32 = arith.constant 0 : i32
    %c0_i32_0 = arith.constant 0 : i32
    %c0_i32_1 = arith.constant 0 : i32
    return %c0_i32, %c0_i32_0 : i32, i32
  }
  func.func @transform_3(%arg0: i32, %arg1: i32) -> (i32, i32) {
    %c0_i32 = arith.constant 0 : i32
    %c0_i32_0 = arith.constant 0 : i32
    %c0_i32_1 = arith.constant 0 : i32
    return %c0_i32, %c0_i32_0 : i32, i32
  }
  func.func @transform_4(%arg0: i32, %arg1: i32) -> (i32, i32, i32, i32) {
    %c0_i32 = arith.constant 0 : i32
    %c0_i32_0 = arith.constant 0 : i32
    %c0_i32_1 = arith.constant 0 : i32
    return %c0_i32, %arg0, %c0_i32_0, %arg1 : i32, i32, i32, i32
  }
  func.func @transform_5(%arg0: i32, %arg1: i32) -> (i32, i32, i32, i32) {
    %c0_i32 = arith.constant 0 : i32
    %c0_i32_0 = arith.constant 0 : i32
    %c0_i32_1 = arith.constant 0 : i32
    return %arg0, %arg1, %c0_i32, %c0_i32_0 : i32, i32, i32, i32
  }
}

</mosaic_0001>

<llo_original>
// kernel: tpu_custom_call.1
$region0: #{tpu_custom_call.1}
  #allocation0 [shape = 'u32[]', space=smem, size = 0x4, offset = 0x4, fixed_abs, tag = 'smem constant byte address 0x4 - core index']
  #allocation1 [shape = 'u32[72,128]{1,0:T(1,128)}', space=vmem, size = 0x9000, scoped, tag = 'internal scratch']
  #allocation8 [shape = 's32[]', space=sflag, size = 0x4, offset = 0, fixed_abs, tag = 'sflag constant byte address 0x0 - dummy sync flag']
  %s0 = inlined_call_operand.vmem [shape: f32[2,32,128], index: 0, kind: input, shape index: {}]
  %s1 = inlined_call_operand.hbm [shape: f32[16,32], index: 1, kind: input, shape index: {}]
  %s2 = inlined_call_operand.vmem [shape: f32[32,16], index: 2, kind: input, shape index: {}]
  %s3 = inlined_call_operand.vmem [shape: f32[16,1], index: 3, kind: input, shape index: {}]
  %s4 = inlined_call_operand.hbm [shape: f32[3,2,32,128], index: 4, kind: output, shape index: {0}]
  %s5 = inlined_call_operand.hbm [shape: f32[2,1,8,128], index: 5, kind: output, shape index: {1}]
  %6 = xla_tuple %s4, %s5
  %s7 = sld [smem:[#allocation0]]
  $region61: #{tpu_custom_call.1} parent=0
    _
  %s9 = ssub.s32 1, %s7
  %s10 = scalar_select 0, %s9, %s7
  $region1: #{tpu_custom_call.1} parent=0
    #allocation2 [shape = 'u8[8192]{0}', space=vmem, size = 0x2000, scoped, tag = 'input window, operand 1, single buffered']
    #allocation3 [shape = 's32[2]{0}', space=sflag, size = 0x8, scoped, tag = 'scoped memory for tpu_custom_call.1']
    #allocation4 [shape = 's32[2]{0}', space=sflag, size = 0x8, scoped, tag = 'scoped memory for tpu_custom_call.1']
    #allocation5 [shape = 'u8[98304]{0}', space=vmem, size = 0x18000, scoped, tag = 'output window, operand 0']
    #allocation6 [shape = 'u8[8192]{0}', space=vmem, size = 0x2000, scoped, tag = 'output window, operand 1']
    #allocation7 [shape = 's32[2]{0}', space=sflag, size = 0x8, scoped, tag = 'scoped memory for tpu_custom_call.1']
    %11 = vsyncpa [#allocation3], 0
    %12 = vsyncpa [#allocation4], 0
    %s13 = scalar_lea.sflag [#allocation4], 1
    %14 = vsyncpa %s13, 0
    %15 = vsyncpa [#allocation7], 0
    %s16 = scalar_lea.sflag [#allocation7], 1
    %17 = vsyncpa %s16, 0
    loop: start=0, step=1, limit=4
    $region2: #{tpu_custom_call.1} parent=1 // loop_pre_header
      _
    $region3: #{tpu_custom_call.1} parent=1 // loop_header
      %s19 = sphi 0, %s23
      %p20 = scmp.ge.s32.totalorder %s19, 4
      %s26 = sphi 0, %s38
      %s27 = sphi 0, %s34
      %s28 = sphi 0, %s26
      %s29 = sphi 0, %s27
      %s30 = sphi 0, %s28
      %s31 = sphi 0, %s29
      %s43 = sphi 0, %s45
      %s46 = sphi 0, %s43
      %s47 = sphi 0, %s46
      %s63 = sphi 0, %s47
      %s67 = sphi 0, %s67
      %s69 = sphi 0, %s67
      %s70 = sphi 0, %s69
      %s84 = sphi 0, %s70
      %s88 = sphi 0, %s88
      %s90 = sphi 0, %s88
      %s91 = sphi 0, %s90
      %s105 = sphi 0, %s91
      %s109 = sphi 0, %s109
      %s111 = sphi 0, %s109
      %s112 = sphi 0, %s111
      %s126 = sphi 0, %s112
      %s134 = sphi 0, %s136
      %s137 = sphi 0, %s134
      %s138 = sphi 0, %s137
      %s154 = sphi 0, %s138
      %s162 = sphi 0, %s164
      %s165 = sphi 0, %s162
      %s166 = sphi 0, %s165
      %s182 = sphi 0, %s166
    $region4: #{tpu_custom_call.1} parent=1 // loop_header_branch
      %22 = sbr.rel (%p20) target = $region8
    $region5: #{tpu_custom_call.1} parent=1 // loop_body
      %s24 = ssub.s32 %s19, 1
      %s25 = ssub.s32 %s19, 2
      %s32 = sadd.s32 1, %s27
      %p33 = scmp.ge.s32.totalorder %s32, 1
      %s34 = scalar_select %p33, 0, %s32
      %s35 = sadd.s32 1, %s26
      %s36 = scalar_select %p33, %s35, %s26
      %p37 = scmp.ge.s32.totalorder %s36, 2
      %s38 = scalar_select %p37, 0, %s36
      %s39 = ssub.s32 %s26, %s38
      %s40 = ssub.s32 %s27, %s34
      %s41 = sor.u32 %s39, %s40
      %p42 = scmp.eq.s32.totalorder %s41, 0
      %s44 = sadd.s32 %s43, 1
      %s45 = scalar_select %p42, %s43, %s44
      %p48 = pneg %p42
      %p49 = scmp.eq.s32.totalorder %s19, 1
      %p50 = por %p48, %p49
      %p51 = scmp.ne.s32.totalorder %s43, %s46
      %p52 = scmp.eq.s32.totalorder %s19, 0
      %p53 = por %p51, %p52
      %p54 = scmp.ne.s32.totalorder %s43, %s46
      %p55 = scmp.eq.s32.totalorder %s24, 1
      %p56 = por %p54, %p55
      %p57 = scmp.ne.s32.totalorder %s46, %s47
      %p58 = scmp.eq.s32.totalorder %s24, 0
      %p59 = por %p57, %p58
      %p60 = scmp.ne.s32.totalorder %s46, %s47
      %p61 = scmp.eq.s32.totalorder %s25, 1
      %p62 = por %p60, %p61
      %p64 = scmp.ne.s32.totalorder %s47, %s63
      %p65 = scmp.eq.s32.totalorder %s25, 0
      %p66 = por %p64, %p65
      %s68 = sadd.s32 %s67, 1
      %p71 = scmp.eq.s32.totalorder %s19, 1
      %p72 = scmp.ne.s32.totalorder %s67, %s69
      %p73 = scmp.eq.s32.totalorder %s19, 0
      %p74 = por %p72, %p73
      %p75 = scmp.ne.s32.totalorder %s67, %s69
      %p76 = scmp.eq.s32.totalorder %s24, 1
      %p77 = por %p75, %p76
      %p78 = scmp.ne.s32.totalorder %s69, %s70
      %p79 = scmp.eq.s32.totalorder %s24, 0
      %p80 = por %p78, %p79
      %p81 = scmp.ne.s32.totalorder %s69, %s70
      %p82 = scmp.eq.s32.totalorder %s25, 1
      %p83 = por %p81, %p82
      %p85 = scmp.ne.s32.totalorder %s70, %s84
      %p86 = scmp.eq.s32.totalorder %s25, 0
      %p87 = por %p85, %p86
      %s89 = sadd.s32 %s88, 1
      %p92 = scmp.eq.s32.totalorder %s19, 1
      %p93 = scmp.ne.s32.totalorder %s88, %s90
      %p94 = scmp.eq.s32.totalorder %s19, 0
      %p95 = por %p93, %p94
      %p96 = scmp.ne.s32.totalorder %s88, %s90
      %p97 = scmp.eq.s32.totalorder %s24, 1
      %p98 = por %p96, %p97
      %p99 = scmp.ne.s32.totalorder %s90, %s91
      %p100 = scmp.eq.s32.totalorder %s24, 0
      %p101 = por %p99, %p100
      %p102 = scmp.ne.s32.totalorder %s90, %s91
      %p103 = scmp.eq.s32.totalorder %s25, 1
      %p104 = por %p102, %p103
      %p106 = scmp.ne.s32.totalorder %s91, %s105
      %p107 = scmp.eq.s32.totalorder %s25, 0
      %p108 = por %p106, %p107
      %s110 = sadd.s32 %s109, 1
      %p113 = scmp.eq.s32.totalorder %s19, 1
      %p114 = scmp.ne.s32.totalorder %s109, %s111
      %p115 = scmp.eq.s32.totalorder %s19, 0
      %p116 = por %p114, %p115
      %p117 = scmp.ne.s32.totalorder %s109, %s111
      %p118 = scmp.eq.s32.totalorder %s24, 1
      %p119 = por %p117, %p118
      %p120 = scmp.ne.s32.totalorder %s111, %s112
      %p121 = scmp.eq.s32.totalorder %s24, 0
      %p122 = por %p120, %p121
      %p123 = scmp.ne.s32.totalorder %s111, %s112
      %p124 = scmp.eq.s32.totalorder %s25, 1
      %p125 = por %p123, %p124
      %p127 = scmp.ne.s32.totalorder %s112, %s126
      %p128 = scmp.eq.s32.totalorder %s25, 0
      %p129 = por %p127, %p128
      %s130 = ssub.s32 %s26, %s38
      %s131 = ssub.s32 %s27, %s34
      %s132 = sor.u32 %s130, %s131
      %p133 = scmp.eq.s32.totalorder %s132, 0
      %s135 = sadd.s32 %s134, 1
      %s136 = scalar_select %p133, %s134, %s135
      %p139 = pneg %p133
      %p140 = scmp.eq.s32.totalorder %s19, 1
      %p141 = por %p139, %p140
      %p142 = scmp.ne.s32.totalorder %s134, %s137
      %p143 = scmp.eq.s32.totalorder %s19, 0
      %p144 = por %p142, %p143
      %p145 = scmp.ne.s32.totalorder %s134, %s137
      %p146 = scmp.eq.s32.totalorder %s24, 1
      %p147 = por %p145, %p146
      %p148 = scmp.ne.s32.totalorder %s137, %s138
      %p149 = scmp.eq.s32.totalorder %s24, 0
      %p150 = por %p148, %p149
      %p151 = scmp.ne.s32.totalorder %s137, %s138
      %p152 = scmp.eq.s32.totalorder %s25, 1
      %p153 = por %p151, %p152
      %p155 = scmp.ne.s32.totalorder %s138, %s154
      %p156 = scmp.eq.s32.totalorder %s25, 0
      %p157 = por %p155, %p156
      %s158 = ssub.s32 %s26, %s38
      %s159 = ssub.s32 %s27, %s34
      %s160 = sor.u32 %s158, %s159
      %p161 = scmp.eq.s32.totalorder %s160, 0
      %s163 = sadd.s32 %s162, 1
      %s164 = scalar_select %p161, %s162, %s163
      %p167 = pneg %p161
      %p168 = scmp.eq.s32.totalorder %s19, 1
      %p169 = por %p167, %p168
      %p170 = scmp.ne.s32.totalorder %s162, %s165
      %p171 = scmp.eq.s32.totalorder %s19, 0
      %p172 = por %p170, %p171
      %p173 = scmp.ne.s32.totalorder %s162, %s165
      %p174 = scmp.eq.s32.totalorder %s24, 1
      %p175 = por %p173, %p174
      %p176 = scmp.ne.s32.totalorder %s165, %s166
      %p177 = scmp.eq.s32.totalorder %s24, 0
      %p178 = por %p176, %p177
      %p179 = scmp.ne.s32.totalorder %s165, %s166
      %p180 = scmp.eq.s32.totalorder %s25, 1
      %p181 = por %p179, %p180
      %p183 = scmp.ne.s32.totalorder %s166, %s182
      %p184 = scmp.eq.s32.totalorder %s25, 0
      %p185 = por %p183, %p184
      %p186 = scmp.le.s32.totalorder 1, %s19
      %p187 = scmp.lt.s32.totalorder %s19, 3
      %p188 = pnand %p186, %p187
      %p189 = pneg %p188
      // Predicated region
      $region9: #{tpu_custom_call.1} parent=5 // pred_check
        _
      $region10: #{tpu_custom_call.1} parent=5 // pred_check_branch
        %191 = sbr.rel (%p188) target = $region12
      $region11: #{tpu_custom_call.1} parent=5 // pred_region
        %s192 = ssub.s32 %s19, 1
        // Predicated region
        $region13: #{tpu_custom_call.1} parent=11 // pred_check
          %p193 = pneg %p80
        $region14: #{tpu_custom_call.1} parent=11 // pred_check_branch
          %195 = sbr.rel (%p193) target = $region16
        $region15: #{tpu_custom_call.1} parent=11 // pred_region
          %197 = vsyncadd [#allocation3], 0
          %s198 = sshll.u32 %s1, 4
          %s199 = int_to_ptr.hbm [resolvable:$true] %s198
          %s200 = sshll.u32 [#allocation2], 4
          %s201 = int_to_ptr.vmem [resolvable:$true] %s200
          %206 = dma.hbm_to_vmem [thread:$0]  %s199, 256, %s201, [#allocation3], 128, 128, 8
        $region16: #{tpu_custom_call.1} parent=11 // pred_fallthru
          _
        // Predicated region
        $region17: #{tpu_custom_call.1} parent=11 // pred_check
          %p207 = pneg %p101
        $region18: #{tpu_custom_call.1} parent=11 // pred_check_branch
          %209 = sbr.rel (%p207) target = $region20
        $region19: #{tpu_custom_call.1} parent=11 // pred_region
          _
        $region20: #{tpu_custom_call.1} parent=11 // pred_fallthru
          _
        // Predicated region
        $region21: #{tpu_custom_call.1} parent=11 // pred_check
          %p210 = pneg %p122
        $region22: #{tpu_custom_call.1} parent=11 // pred_check_branch
          %212 = sbr.rel (%p210) target = $region24
        $region23: #{tpu_custom_call.1} parent=11 // pred_region
          _
        $region24: #{tpu_custom_call.1} parent=11 // pred_fallthru
          _
      $region12: #{tpu_custom_call.1} parent=5 // pred_fallthru
        _
      %p213 = scmp.lt.s32.totalorder %s19, 2
      // Predicated region
      $region25: #{tpu_custom_call.1} parent=5 // pred_check
        %p214 = pneg %p213
      $region26: #{tpu_custom_call.1} parent=5 // pred_check_branch
        %216 = sbr.rel (%p214) target = $region28
      $region27: #{tpu_custom_call.1} parent=5 // pred_region
        // Predicated region
        $region29: #{tpu_custom_call.1} parent=27 // pred_check
          %p217 = pneg %p53
        $region30: #{tpu_custom_call.1} parent=27 // pred_check_branch
          %219 = sbr.rel (%p217) target = $region32
        $region31: #{tpu_custom_call.1} parent=27 // pred_region
          %p220 = scmp.lt.s32.totalorder %s26, 1
          %s221 = scalar_select %p220, %s26, 1
          %p222 = scmp.lt.s32.totalorder %s27, 0
          %s223 = scalar_select %p222, %s27, 0
          %s224 = smul.addr %s221, 4
          %s225 = sadd.s32 %s223, %s224
          %s226 = smul.addr %s225, 8
          %s227 = scalar_lea.vmem %s0, %s226
        $region32: #{tpu_custom_call.1} parent=27 // pred_fallthru
          _
      $region28: #{tpu_custom_call.1} parent=5 // pred_fallthru
        _
      %p228 = scmp.le.s32.totalorder 1, %s19
      %p229 = scmp.lt.s32.totalorder %s19, 3
      %p230 = pnand %p228, %p229
      %p231 = pneg %p230
      // Predicated region
      $region33: #{tpu_custom_call.1} parent=5 // pred_check
        _
      $region34: #{tpu_custom_call.1} parent=5 // pred_check_branch
        %233 = sbr.rel (%p230) target = $region36
      $region35: #{tpu_custom_call.1} parent=5 // pred_region
        %s234 = ssub.s32 %s19, 1
        // Predicated region
        $region37: #{tpu_custom_call.1} parent=35 // pred_check
          %p235 = pneg %p80
        $region38: #{tpu_custom_call.1} parent=35 // pred_check_branch
          %237 = sbr.rel (%p235) target = $region40
        $region39: #{tpu_custom_call.1} parent=35 // pred_region
          %239 = dma.done [#allocation3], 256
        $region40: #{tpu_custom_call.1} parent=35 // pred_fallthru
          _
        %p240 = scmp.lt.s32.totalorder %s28, 1
        %s241 = scalar_select %p240, %s28, 1
        %p242 = scmp.lt.s32.totalorder %s29, 0
        %s243 = scalar_select %p242, %s29, 0
        %s244 = smul.addr %s241, 4
        %s245 = sadd.s32 %s243, %s244
        %s246 = smul.addr %s245, 8
        %s247 = scalar_lea.vmem %s0, %s246
        %p248 = pneg %p59
        %p249 = pneg %p56
        %p250 = pneg %p80
        %p251 = pneg %p77
        %p252 = pneg %p101
        %p253 = pneg %p98
        %p254 = pneg %p122
        %p255 = pneg %p119
        %p256 = pneg %p150
        %p257 = pneg %p147
        %s258 = sand.u32 %s137, 1
        %s259 = scalar_lea.sflag [#allocation4], %s258
        %s260 = sand.u32 %s137, 1
        %s261 = smul.addr %s260, 96
        %s262 = scalar_lea.vmem [#allocation5], %s261
        %p263 = pneg %p178
        %p264 = pneg %p175
        %s265 = sand.u32 %s165, 1
        %s266 = scalar_lea.sflag [#allocation7], %s265
        %s267 = sand.u32 %s165, 1
        %s268 = smul.addr %s267, 8
        %s269 = scalar_lea.vmem [#allocation6], %s268
        %p270 = scmp.lt.s32.totalorder %s28, 1
        %s271 = scalar_select %p270, %s28, 1
        %p272 = scmp.lt.s32.totalorder %s29, 0
        %s273 = scalar_select %p272, %s29, 0
        %s274 = smul.addr %s271, 4
        %s275 = sadd.s32 %s273, %s274
        %s276 = smul.addr %s275, 8
        %s277 = scalar_lea.vmem %s0, %s276
        %v278 = vld [vmem:[%s277] sm:$0xff]
        %v279 = vld [vmem:[%s277 + $0x8] sm:$0xff]
        %v280 = vld [vmem:[%s277 + $0x10] sm:$0xff]
        %v281 = vld [vmem:[%s277 + $0x18] sm:$0xff]
        %v282 = vld [vmem:[#allocation2] sm:$0xff]
        %v283 = vld [vmem:[#allocation2 + $0x8] sm:$0xff]
        %v284 = vld [vmem:[%s3] sm:$0xff]
        %v285 = vld [vmem:[%s3 + $0x8] sm:$0xff]
        %vm286 = vcmask 261120
        %v288 = vsel %vm286, %v282, 0
        %v291 = vsel %vm286, %v283, 0
        %293 = vmatpush.msra.mxu0 0.0
        %294 = vmatpush.msra.mxu0 0.0
        %295 = vmatpush.msra.mxu0 0.0
        %296 = vmatpush.msra.mxu0 0.0
        %297 = vmatpush.msra.mxu0 0.0
        %298 = vmatpush.msra.mxu0 0.0
        %299 = vmatpush.msra.mxu0 0.0
        %300 = vmatpush.msra.mxu0 0.0
        %301 = vmatpush.msra.mxu0 0.0
        %302 = vmatpush.msra.mxu0 0.0
        %303 = vmatpush.msra.mxu0 0.0
        %304 = vmatpush.msra.mxu0 0.0
        %305 = vmatpush.msra.mxu0 %v281
        %306 = vmatpush.msra.mxu0 %v280
        %307 = vmatpush.msra.mxu0 %v279
        %308 = vmatpush.msra.mxu0 %v278
        %309 = vmatmul.f32.gmra.mxu0 %v288
        %v310 = vpop.f32.mrf.mxu0
        %v311 = vadd.f32 0.0, %v310
        %312 = vmatmul.f32.gmra.mxu0 %v291
        %v313 = vpop.f32.mrf.mxu0
        %v314 = vadd.f32 0.0, %v313
        %315 = vdwg.mxu0
        %v316 = vmul.f32 %v311, 2.0
        %v317 = vmul.f32 %v314, 2.0
        %319 = vset.pattern.permute.xlu0 0
        %320 = vperm.xlu0 %319, %v284
        %v321 = vpop.permute.xlu0 %320
        %324 = vset.pattern.permute.xlu0 0
        %325 = vperm.xlu0 %324, %v285
        %v326 = vpop.permute.xlu0 %325
        %v328 = vsub.f32 %v321, %v316
        %v329 = vsub.f32 %v326, %v317
        %v330 = vlaneseq
        %v331 = vshrl.u32 %v330, 7
        %v332 = vadd.s32 %v331, 8
        %s333 = smul.u32 %s29, 128
        %v334 = vlaneseq
        %v335 = vand.u32 %v334, 127
        %v336 = vstv %s333
        %v337 = vadd.s32 %v336, %v335
        %vm338 = vcmp.lt.s32.totalorder %v337, 64
        %vm339 = vcmp.ge.s32.totalorder %v331, 0
        %vm340 = vcmp.ge.s32.totalorder %v332, 0
        %vm341 = vcmp.lt.s32.totalorder %v331, 2
        %vm342 = vcmp.lt.s32.totalorder %v332, 2
        %vm343 = vmand %vm339, %vm341
        %vm344 = vmand %vm340, %vm342
        %v345 = vsel %vm343, %v328, inf
        %v346 = vsel %vm344, %v329, inf
        %v347 = vmin.f32 %v345, %v346
        %v348 = vrot.slane %v347, 4
        %v349 = vmin.f32 %v347, %v348
        %v350 = vrot.slane %v349, 2
        %v351 = vmin.f32 %v349, %v350
        %v352 = vrot.slane %v351, 1
        %v353 = vmin.f32 %v351, %v352
        %vm354 = vcmp.eq.f32.partialorder %v328, %v353
        %vm355 = vcmp.eq.f32.partialorder %v329, %v353
        %vm356 = vmand %vm343, %vm354
        %vm357 = vmand %vm344, %vm355
        %v358 = vsel %vm356, %v331, 16
        %v359 = vsel %vm357, %v332, 16
        %vm360 = vcmp.lt.s32.totalorder %v358, %v359
        %v361 = vsel %vm360, %v358, %v359
        %v362 = vrot.slane %v361, 4
        %vm363 = vcmp.lt.s32.totalorder %v361, %v362
        %v364 = vsel %vm363, %v361, %v362
        %v365 = vrot.slane %v364, 2
        %vm366 = vcmp.lt.s32.totalorder %v364, %v365
        %v367 = vsel %vm366, %v364, %v365
        %v368 = vrot.slane %v367, 1
        %vm369 = vcmp.lt.s32.totalorder %v367, %v368
        %v370 = vsel %vm369, %v367, %v368
        %v371 = vld [vmem:[%s2] sm:$0xff]
        %v372 = vld [vmem:[%s2 + $0x8] sm:$0xff]
        %v373 = vld [vmem:[%s2 + $0x10] sm:$0xff]
        %v374 = vld [vmem:[%s2 + $0x18] sm:$0xff]
        %vm375 = vcmp.eq.s32.totalorder %v370, 0
        %v376 = vsel %vm375, 1, 0
        %vm377 = vcmp.eq.s32.totalorder %v376, 1
        %379 = vset.pattern.permute.xlu0 0
        %380 = vperm.xlu0 %379, %v371
        %v381 = vpop.permute.xlu0 %380
        %384 = vset.pattern.permute.xlu0 0
        %385 = vperm.xlu0 %384, %v372
        %v386 = vpop.permute.xlu0 %385
        %389 = vset.pattern.permute.xlu0 0
        %390 = vperm.xlu0 %389, %v373
        %v391 = vpop.permute.xlu0 %390
        %394 = vset.pattern.permute.xlu0 0
        %395 = vperm.xlu0 %394, %v374
        %v396 = vpop.permute.xlu0 %395
        %v398 = vsel %vm377, %v381, 0.0
        %v399 = vsel %vm377, %v386, 0.0
        %v400 = vsel %vm377, %v391, 0.0
        %v401 = vsel %vm377, %v396, 0.0
        %vm402 = vcmp.eq.s32.totalorder %v370, 1
        %v403 = vsel %vm402, 1, 0
        %vm404 = vcmp.eq.s32.totalorder %v403, 1
        %405 = vset.pattern.permute.xlu0 1
        %406 = vperm.xlu0 %405, %v371
        %v407 = vpop.permute.xlu0 %406
        %409 = vset.pattern.permute.xlu0 1
        %410 = vperm.xlu0 %409, %v372
        %v411 = vpop.permute.xlu0 %410
        %413 = vset.pattern.permute.xlu0 1
        %414 = vperm.xlu0 %413, %v373
        %v415 = vpop.permute.xlu0 %414
        %417 = vset.pattern.permute.xlu0 1
        %418 = vperm.xlu0 %417, %v374
        %v419 = vpop.permute.xlu0 %418
        %v421 = vsel %vm404, %v407, %v398
        %v422 = vsel %vm404, %v411, %v399
        %v423 = vsel %vm404, %v415, %v400
        %v424 = vsel %vm404, %v419, %v401
        %425 = vst [vmem:[%s262] sm:$0xff] %v421
        %426 = vst [vmem:[%s262 + $0x8] sm:$0xff] %v422
        %427 = vst [vmem:[%s262 + $0x10] sm:$0xff] %v423
        %428 = vst [vmem:[%s262 + $0x18] sm:$0xff] %v424
        %v429 = vsub.f32 %v421, %v278
        %v430 = vsub.f32 %v422, %v279
        %v431 = vsub.f32 %v423, %v280
        %v432 = vsub.f32 %v424, %v281
        %v433 = vmul.f32 %v429, %v429
        %v434 = vmul.f32 %v430, %v430
        %v435 = vmul.f32 %v431, %v431
        %v436 = vmul.f32 %v432, %v432
        %v437 = vadd.f32 %v433, %v434
        %v438 = vadd.f32 %v437, %v435
        %v439 = vadd.f32 %v438, %v436
        %v440 = vrot.slane %v439, 4
        %v441 = vadd.f32 %v439, %v440
        %v442 = vrot.slane %v441, 2
        %v443 = vadd.f32 %v441, %v442
        %v444 = vrot.slane %v443, 1
        %v445 = vadd.f32 %v443, %v444
        %v446 = vsel %vm338, %v445, 0.0
        %447 = vadd.xlane.f32.xlu0 %v446
        %v448 = vpop.xlane.xlu0 %447
        %vm449 = vcmp.eq.s32.totalorder %v331, 0
        %v450 = vsel %vm449, %v448, 0.0
        %v451 = vadd.f32 %v450, 0.0
        %vm452 = vcmp.ge.s32.totalorder %v331, 2
        %vm453 = vcmp.ge.s32.totalorder %v332, 2
        %vm454 = vcmp.lt.s32.totalorder %v331, 4
        %vm455 = vcmp.lt.s32.totalorder %v332, 4
        %vm456 = vmand %vm452, %vm454
        %vm457 = vmand %vm453, %vm455
        %v458 = vsel %vm456, %v328, inf
        %v459 = vsel %vm457, %v329, inf
        %v460 = vmin.f32 %v458, %v459
        %v461 = vrot.slane %v460, 4
        %v462 = vmin.f32 %v460, %v461
        %v463 = vrot.slane %v462, 2
        %v464 = vmin.f32 %v462, %v463
        %v465 = vrot.slane %v464, 1
        %v466 = vmin.f32 %v464, %v465
        %vm467 = vcmp.eq.f32.partialorder %v328, %v466
        %vm468 = vcmp.eq.f32.partialorder %v329, %v466
        %vm469 = vmand %vm456, %vm467
        %vm470 = vmand %vm457, %vm468
        %v471 = vsel %vm469, %v331, 16
        %v472 = vsel %vm470, %v332, 16
        %vm473 = vcmp.lt.s32.totalorder %v471, %v472
        %v474 = vsel %vm473, %v471, %v472
        %v475 = vrot.slane %v474, 4
        %vm476 = vcmp.lt.s32.totalorder %v474, %v475
        %v477 = vsel %vm476, %v474, %v475
        %v478 = vrot.slane %v477, 2
        %vm479 = vcmp.lt.s32.totalorder %v477, %v478
        %v480 = vsel %vm479, %v477, %v478
        %v481 = vrot.slane %v480, 1
        %vm482 = vcmp.lt.s32.totalorder %v480, %v481
        %v483 = vsel %vm482, %v480, %v481
        %v484 = vld [vmem:[%s2] sm:$0xff]
        %v485 = vld [vmem:[%s2 + $0x8] sm:$0xff]
        %v486 = vld [vmem:[%s2 + $0x10] sm:$0xff]
        %v487 = vld [vmem:[%s2 + $0x18] sm:$0xff]
        %vm488 = vcmp.eq.s32.totalorder %v483, 2
        %v489 = vsel %vm488, 1, 0
        %vm490 = vcmp.eq.s32.totalorder %v489, 1
        %492 = vset.pattern.permute.xlu0 2
        %493 = vperm.xlu0 %492, %v484
        %v494 = vpop.permute.xlu0 %493
        %497 = vset.pattern.permute.xlu0 2
        %498 = vperm.xlu0 %497, %v485
        %v499 = vpop.permute.xlu0 %498
        %502 = vset.pattern.permute.xlu0 2
        %503 = vperm.xlu0 %502, %v486
        %v504 = vpop.permute.xlu0 %503
        %507 = vset.pattern.permute.xlu0 2
        %508 = vperm.xlu0 %507, %v487
        %v509 = vpop.permute.xlu0 %508
        %v511 = vsel %vm490, %v494, 0.0
        %v512 = vsel %vm490, %v499, 0.0
        %v513 = vsel %vm490, %v504, 0.0
        %v514 = vsel %vm490, %v509, 0.0
        %vm515 = vcmp.eq.s32.totalorder %v483, 3
        %v516 = vsel %vm515, 1, 0
        %vm517 = vcmp.eq.s32.totalorder %v516, 1
        %518 = vset.pattern.permute.xlu0 3
        %519 = vperm.xlu0 %518, %v484
        %v520 = vpop.permute.xlu0 %519
        %522 = vset.pattern.permute.xlu0 3
        %523 = vperm.xlu0 %522, %v485
        %v524 = vpop.permute.xlu0 %523
        %526 = vset.pattern.permute.xlu0 3
        %527 = vperm.xlu0 %526, %v486
        %v528 = vpop.permute.xlu0 %527
        %530 = vset.pattern.permute.xlu0 3
        %531 = vperm.xlu0 %530, %v487
        %v532 = vpop.permute.xlu0 %531
        %v534 = vsel %vm517, %v520, %v511
        %v535 = vsel %vm517, %v524, %v512
        %v536 = vsel %vm517, %v528, %v513
        %v537 = vsel %vm517, %v532, %v514
        %vm538 = vcmp.lt.f32.partialorder %v466, %v353
        %v539 = vsel %vm538, 1, 0
        %vm540 = vcmp.eq.s32.totalorder %v539, 1
        %v541 = vsel %vm540, %v534, %v421
        %v542 = vsel %vm540, %v535, %v422
        %v543 = vsel %vm540, %v536, %v423
        %v544 = vsel %vm540, %v537, %v424
        %v545 = vmin.f32 %v353, %v466
        %s546 = scalar_lea.vmem %s262, 32 [#allocation5]
        %547 = vst [vmem:[%s546] sm:$0xff] %v541
        %548 = vst [vmem:[%s546 + $0x8] sm:$0xff] %v542
        %549 = vst [vmem:[%s546 + $0x10] sm:$0xff] %v543
        %550 = vst [vmem:[%s546 + $0x18] sm:$0xff] %v544
        %v551 = vsub.f32 %v541, %v278
        %v552 = vsub.f32 %v542, %v279
        %v553 = vsub.f32 %v543, %v280
        %v554 = vsub.f32 %v544, %v281
        %v555 = vmul.f32 %v551, %v551
        %v556 = vmul.f32 %v552, %v552
        %v557 = vmul.f32 %v553, %v553
        %v558 = vmul.f32 %v554, %v554
        %v559 = vadd.f32 %v555, %v556
        %v560 = vadd.f32 %v559, %v557
        %v561 = vadd.f32 %v560, %v558
        %v562 = vrot.slane %v561, 4
        %v563 = vadd.f32 %v561, %v562
        %v564 = vrot.slane %v563, 2
        %v565 = vadd.f32 %v563, %v564
        %v566 = vrot.slane %v565, 1
        %v567 = vadd.f32 %v565, %v566
        %v568 = vsel %vm338, %v567, 0.0
        %569 = vadd.xlane.f32.xlu0 %v568
        %v570 = vpop.xlane.xlu0 %569
        %vm571 = vcmp.eq.s32.totalorder %v331, 1
        %v572 = vsel %vm571, %v570, 0.0
        %v573 = vadd.f32 %v451, %v572
        %vm574 = vcmp.ge.s32.totalorder %v331, 4
        %vm575 = vcmp.ge.s32.totalorder %v332, 4
        %vm576 = vcmp.lt.s32.totalorder %v331, 8
        %vm577 = vcmp.lt.s32.totalorder %v332, 8
        %vm578 = vmand %vm574, %vm576
        %vm579 = vmand %vm575, %vm577
        %v580 = vsel %vm578, %v328, inf
        %v581 = vsel %vm579, %v329, inf
        %v582 = vmin.f32 %v580, %v581
        %v583 = vrot.slane %v582, 4
        %v584 = vmin.f32 %v582, %v583
        %v585 = vrot.slane %v584, 2
        %v586 = vmin.f32 %v584, %v585
        %v587 = vrot.slane %v586, 1
        %v588 = vmin.f32 %v586, %v587
        %vm589 = vcmp.eq.f32.partialorder %v328, %v588
        %vm590 = vcmp.eq.f32.partialorder %v329, %v588
        %vm591 = vmand %vm578, %vm589
        %vm592 = vmand %vm579, %vm590
        %v593 = vsel %vm591, %v331, 16
        %v594 = vsel %vm592, %v332, 16
        %vm595 = vcmp.lt.s32.totalorder %v593, %v594
        %v596 = vsel %vm595, %v593, %v594
        %v597 = vrot.slane %v596, 4
        %vm598 = vcmp.lt.s32.totalorder %v596, %v597
        %v599 = vsel %vm598, %v596, %v597
        %v600 = vrot.slane %v599, 2
        %vm601 = vcmp.lt.s32.totalorder %v599, %v600
        %v602 = vsel %vm601, %v599, %v600
        %v603 = vrot.slane %v602, 1
        %vm604 = vcmp.lt.s32.totalorder %v602, %v603
        %v605 = vsel %vm604, %v602, %v603
        %v606 = vld [vmem:[%s2] sm:$0xff]
        %v607 = vld [vmem:[%s2 + $0x8] sm:$0xff]
        %v608 = vld [vmem:[%s2 + $0x10] sm:$0xff]
        %v609 = vld [vmem:[%s2 + $0x18] sm:$0xff]
        %vm610 = vcmp.eq.s32.totalorder %v605, 4
        %v611 = vsel %vm610, 1, 0
        %vm612 = vcmp.eq.s32.totalorder %v611, 1
        %614 = vset.pattern.permute.xlu0 4
        %615 = vperm.xlu0 %614, %v606
        %v616 = vpop.permute.xlu0 %615
        %619 = vset.pattern.permute.xlu0 4
        %620 = vperm.xlu0 %619, %v607
        %v621 = vpop.permute.xlu0 %620
        %624 = vset.pattern.permute.xlu0 4
        %625 = vperm.xlu0 %624, %v608
        %v626 = vpop.permute.xlu0 %625
        %629 = vset.pattern.permute.xlu0 4
        %630 = vperm.xlu0 %629, %v609
        %v631 = vpop.permute.xlu0 %630
        %v633 = vsel %vm612, %v616, 0.0
        %v634 = vsel %vm612, %v621, 0.0
        %v635 = vsel %vm612, %v626, 0.0
        %v636 = vsel %vm612, %v631, 0.0
        %vm637 = vcmp.eq.s32.totalorder %v605, 5
        %v638 = vsel %vm637, 1, 0
        %vm639 = vcmp.eq.s32.totalorder %v638, 1
        %640 = vset.pattern.permute.xlu0 5
        %641 = vperm.xlu0 %640, %v606
        %v642 = vpop.permute.xlu0 %641
        %644 = vset.pattern.permute.xlu0 5
        %645 = vperm.xlu0 %644, %v607
        %v646 = vpop.permute.xlu0 %645
        %648 = vset.pattern.permute.xlu0 5
        %649 = vperm.xlu0 %648, %v608
        %v650 = vpop.permute.xlu0 %649
        %652 = vset.pattern.permute.xlu0 5
        %653 = vperm.xlu0 %652, %v609
        %v654 = vpop.permute.xlu0 %653
        %v656 = vsel %vm639, %v642, %v633
        %v657 = vsel %vm639, %v646, %v634
        %v658 = vsel %vm639, %v650, %v635
        %v659 = vsel %vm639, %v654, %v636
        %vm660 = vcmp.eq.s32.totalorder %v605, 6
        %v661 = vsel %vm660, 1, 0
        %vm662 = vcmp.eq.s32.totalorder %v661, 1
        %663 = vset.pattern.permute.xlu0 6
        %664 = vperm.xlu0 %663, %v606
        %v665 = vpop.permute.xlu0 %664
        %667 = vset.pattern.permute.xlu0 6
        %668 = vperm.xlu0 %667, %v607
        %v669 = vpop.permute.xlu0 %668
        %671 = vset.pattern.permute.xlu0 6
        %672 = vperm.xlu0 %671, %v608
        %v673 = vpop.permute.xlu0 %672
        %675 = vset.pattern.permute.xlu0 6
        %676 = vperm.xlu0 %675, %v609
        %v677 = vpop.permute.xlu0 %676
        %v679 = vsel %vm662, %v665, %v656
        %v680 = vsel %vm662, %v669, %v657
        %v681 = vsel %vm662, %v673, %v658
        %v682 = vsel %vm662, %v677, %v659
        %vm683 = vcmp.eq.s32.totalorder %v605, 7
        %v684 = vsel %vm683, 1, 0
        %vm685 = vcmp.eq.s32.totalorder %v684, 1
        %686 = vset.pattern.permute.xlu0 7
        %687 = vperm.xlu0 %686, %v606
        %v688 = vpop.permute.xlu0 %687
        %690 = vset.pattern.permute.xlu0 7
        %691 = vperm.xlu0 %690, %v607
        %v692 = vpop.permute.xlu0 %691
        %694 = vset.pattern.permute.xlu0 7
        %695 = vperm.xlu0 %694, %v608
        %v696 = vpop.permute.xlu0 %695
        %698 = vset.pattern.permute.xlu0 7
        %699 = vperm.xlu0 %698, %v609
        %v700 = vpop.permute.xlu0 %699
        %v702 = vsel %vm685, %v688, %v679
        %v703 = vsel %vm685, %v692, %v680
        %v704 = vsel %vm685, %v696, %v681
        %v705 = vsel %vm685, %v700, %v682
        %vm706 = vcmp.lt.f32.partialorder %v588, %v545
        %v707 = vsel %vm706, 1, 0
        %vm708 = vcmp.eq.s32.totalorder %v707, 1
        %v709 = vsel %vm708, %v702, %v541
        %v710 = vsel %vm708, %v703, %v542
        %v711 = vsel %vm708, %v704, %v543
        %v712 = vsel %vm708, %v705, %v544
        %s713 = scalar_lea.vmem %s262, 64 [#allocation5]
        %714 = vst [vmem:[%s713] sm:$0xff] %v709
        %715 = vst [vmem:[%s713 + $0x8] sm:$0xff] %v710
        %716 = vst [vmem:[%s713 + $0x10] sm:$0xff] %v711
        %717 = vst [vmem:[%s713 + $0x18] sm:$0xff] %v712
        %v718 = vsub.f32 %v709, %v278
        %v719 = vsub.f32 %v710, %v279
        %v720 = vsub.f32 %v711, %v280
        %v721 = vsub.f32 %v712, %v281
        %v722 = vmul.f32 %v718, %v718
        %v723 = vmul.f32 %v719, %v719
        %v724 = vmul.f32 %v720, %v720
        %v725 = vmul.f32 %v721, %v721
        %v726 = vadd.f32 %v722, %v723
        %v727 = vadd.f32 %v726, %v724
        %v728 = vadd.f32 %v727, %v725
        %v729 = vrot.slane %v728, 4
        %v730 = vadd.f32 %v728, %v729
        %v731 = vrot.slane %v730, 2
        %v732 = vadd.f32 %v730, %v731
        %v733 = vrot.slane %v732, 1
        %v734 = vadd.f32 %v732, %v733
        %v735 = vsel %vm338, %v734, 0.0
        %736 = vadd.xlane.f32.xlu0 %v735
        %v737 = vpop.xlane.xlu0 %736
        %vm738 = vcmp.eq.s32.totalorder %v331, 2
        %v739 = vsel %vm738, %v737, 0.0
        %v740 = vadd.f32 %v573, %v739
        %741 = vst [vmem:[%s269] sm:$0xff] %v740
        %s742 = sand.u32 %s137, 1
        %s743 = scalar_lea.sflag [#allocation4], %s742
        %s744 = sand.u32 %s137, 1
        %s745 = smul.addr %s744, 96
        %s746 = scalar_lea.vmem [#allocation5], %s745
        %s747 = sand.u32 %s165, 1
        %s748 = scalar_lea.sflag [#allocation7], %s747
        %s749 = sand.u32 %s165, 1
        %s750 = smul.addr %s749, 8
        %s751 = scalar_lea.vmem [#allocation6], %s750
        // Predicated region
        $region41: #{tpu_custom_call.1} parent=35 // pred_check
          %p752 = pneg %p147
        $region42: #{tpu_custom_call.1} parent=35 // pred_check_branch
          %754 = sbr.rel (%p752) target = $region44
        $region43: #{tpu_custom_call.1} parent=35 // pred_region
          #allocation9 [shape = 'u32[6]{0}', space=smem, size = 0x18, scoped, tag = 'DMA stride descriptor']
          %756 = vsyncadd %s743, 0
          %s757 = smul.addr %s28, 4
          %s758 = sadd.s32 %s29, %s757
          %s759 = smul.addr %s758, 8
          %s760 = scalar_lea.hbm %s4, %s759
          %s762 = sshll.u32 1, 14
          %s763 = sxor.u32 4294967295, %s762
          %s766 = sshll.u32 7, 18
          %s767 = sxor.u32 4294967295, %s766
          %s768 = sand.u32 0, %s767
          %s770 = sor.u32 %s768, 0
          %s771 = sshll.u32 %s746, 4
          %s772 = int_to_ptr.vmem [resolvable:$true] %s771
          %s773 = sshll.u32 %s760, 4
          %s774 = int_to_ptr.hbm [resolvable:$true] %s773
          %780 = sst [smem:[#allocation9]] 512
          %s781 = scalar_lea.smem [#allocation9], 1
          %782 = sst [smem:[%s781]] 1024
          %s783 = scalar_lea.smem [#allocation9], 2
          %784 = sst [smem:[%s783]] 4
          %s785 = scalar_lea.smem [#allocation9], 3
          %786 = sst [smem:[%s785]] 128
          %s787 = scalar_lea.smem [#allocation9], 4
          %788 = sst [smem:[%s787]] 128
          %s789 = scalar_lea.smem [#allocation9], 5
          %790 = sst [smem:[%s789]] 8
          %792 = dma.general %s772, 1536, %s774, %s743, [#allocation8], [#allocation9], %s770, 0
        $region44: #{tpu_custom_call.1} parent=35 // pred_fallthru
          _
        // Predicated region
        $region45: #{tpu_custom_call.1} parent=35 // pred_check
          %p793 = pneg %p175
        $region46: #{tpu_custom_call.1} parent=35 // pred_check_branch
          %795 = sbr.rel (%p793) target = $region48
        $region47: #{tpu_custom_call.1} parent=35 // pred_region
          %797 = vsyncadd %s748, 0
          %s798 = sadd.s32 %s29, %s28
          %s799 = smul.addr %s798, 8
          %s800 = scalar_lea.hbm %s5, %s799
          %s802 = sshll.u32 %s751, 4
          %s803 = int_to_ptr.vmem [resolvable:$true] %s802
          %s804 = sshll.u32 %s800, 4
          %s805 = int_to_ptr.hbm [resolvable:$true] %s804
          %807 = dma.vmem_to_hbm [thread:$0]  %s803, 128, %s805, %s748
        $region48: #{tpu_custom_call.1} parent=35 // pred_fallthru
          _
      $region36: #{tpu_custom_call.1} parent=5 // pred_fallthru
        _
      %p808 = scmp.le.s32.totalorder 2, %s19
      // Predicated region
      $region49: #{tpu_custom_call.1} parent=5 // pred_check
        %p809 = pneg %p808
      $region50: #{tpu_custom_call.1} parent=5 // pred_check_branch
        %811 = sbr.rel (%p809) target = $region52
      $region51: #{tpu_custom_call.1} parent=5 // pred_region
        %s812 = ssub.s32 %s19, 2
        // Predicated region
        $region53: #{tpu_custom_call.1} parent=51 // pred_check
          %p813 = pneg %p153
        $region54: #{tpu_custom_call.1} parent=51 // pred_check_branch
          %815 = sbr.rel (%p813) target = $region56
        $region55: #{tpu_custom_call.1} parent=51 // pred_region
          %s816 = sand.u32 %s138, 1
          %s817 = scalar_lea.sflag [#allocation4], %s816
          %s818 = sand.u32 %s138, 1
          %s819 = smul.addr %s818, 96
          %s820 = scalar_lea.vmem [#allocation5], %s819
          %822 = dma.done %s817, 1536
        $region56: #{tpu_custom_call.1} parent=51 // pred_fallthru
          _
        // Predicated region
        $region57: #{tpu_custom_call.1} parent=51 // pred_check
          %p823 = pneg %p181
        $region58: #{tpu_custom_call.1} parent=51 // pred_check_branch
          %825 = sbr.rel (%p823) target = $region60
        $region59: #{tpu_custom_call.1} parent=51 // pred_region
          %s826 = sand.u32 %s166, 1
          %s827 = scalar_lea.sflag [#allocation7], %s826
          %s828 = sand.u32 %s166, 1
          %s829 = smul.addr %s828, 8
          %s830 = scalar_lea.vmem [#allocation6], %s829
          %832 = dma.done %s827, 128
        $region60: #{tpu_custom_call.1} parent=51 // pred_fallthru
          _
      $region52: #{tpu_custom_call.1} parent=5 // pred_fallthru
        _
    $region6: #{tpu_custom_call.1} parent=1 // loop_footer
      %s23 = sadd.s32 1, %s19
    $region7: #{tpu_custom_call.1} parent=1 // loop_footer_branch
      %18 = sbr.rel target = $region3
    $region8: #{tpu_custom_call.1} parent=1 // loop_exit
      _
    %833 = vsyncpa [#allocation3], 1
    %s834 = scalar_lea.sflag [#allocation3], 1
    %835 = vsyncpa %s834, 1
    %836 = vsyncpa [#allocation4], 1
    %s837 = scalar_lea.sflag [#allocation4], 1
    %838 = vsyncpa %s837, 1
    %839 = vsyncpa [#allocation7], 1
    %s840 = scalar_lea.sflag [#allocation7], 1
    %841 = vsyncpa %s840, 1

</llo_original>
